<compile_context>
chip_gen: v7x
topology: tpu7x:2x2x1
jax: 0.10.0
libtpu: 0.0.40
codegen_flags: <defaults>
</compile_context>

<pallas_src>
import numpy as np
import jax
import jax.numpy as jnp
from jax.experimental import pallas as pl
from jax.experimental.pallas import tpu as pltpu


def _round_up(x, m):
    return ((x + m - 1) // m) * m


def time_encode_kernel(t_ref, w_ref, b_ref, o_ref):
    # t_ref: (1, TILE_N)        -- timestamps on the lane axis (lane-dense)
    # w_ref: (D, 1), b_ref: (D, 1) -- tiny, resident (constant block index)
    # o_ref: (D, TILE_N)        -- lane-dense output block
    # Single fused VPU mul-add + EUP cos; no intermediate temporaries.
    # .astype is a no-op when out_dtype == f32.
    o_ref[...] = jnp.cos(t_ref[...] * w_ref[...] + b_ref[...]).astype(o_ref.dtype)


def time_encode(t, w, b, *, block_lanes=4096, out_dtype=jnp.float32):
    """out[i, d] = cos(t[i] * w[d] + b[d])  (== PyTorch TimeEncode.forward).

    t: (N,) float; w: (D,) (Linear(1, D).weight squeezed); b: (D,).
    The kernel works in a transposed (D, N) layout (N on lanes); the wrapper
    pads N to the lane tile, then slices and transposes back to (N, D).
    """
    n = int(t.shape[0])
    d = int(w.shape[0])

    # Lane tile: multiple of 128 (unmasked vst), as large as reasonable to
    # amortize per-grid-step overhead.  For D=32: (32, 4096) f32 = 512 KiB,
    # ~1 MiB double-buffered -> comfortably under the scoped-VMEM default on
    # v5e / v6e / v7x.  Re-derive if D grows into the hundreds.
    block_lanes = _round_up(max(int(block_lanes), 128), 128)
    tile_n = min(block_lanes, _round_up(max(n, 1), 128))
    n_pad = _round_up(max(n, 1), tile_n)

    t2 = jnp.zeros((1, n_pad), jnp.float32).at[0, :n].set(t.astype(jnp.float32))
    w2 = w.astype(jnp.float32).reshape(d, 1)
    b2 = b.astype(jnp.float32).reshape(d, 1)

    grid = (n_pad // tile_n,)
    cost = pl.CostEstimate(
        flops=2 * d * n_pad,
        transcendentals=d * n_pad,
        bytes_accessed=4 * (n_pad + 2 * d) + jnp.dtype(out_dtype).itemsize * d * n_pad,
    )

    out_t = pl.pallas_call(
        time_encode_kernel,
        out_shape=jax.ShapeDtypeStruct((d, n_pad), out_dtype),
        grid_spec=pltpu.PrefetchScalarGridSpec(
            num_scalar_prefetch=0,
            grid=grid,
            in_specs=[
                pl.BlockSpec((1, tile_n), lambda i: (0, i)),  # t, lane-dense
                pl.BlockSpec((d, 1), lambda i: (0, 0)),       # w, resident
                pl.BlockSpec((d, 1), lambda i: (0, 0)),       # b, resident
            ],
            out_specs=pl.BlockSpec((d, tile_n), lambda i: (0, i)),
        ),
        compiler_params=pltpu.CompilerParams(
            dimension_semantics=("parallel",),  # shards across v7x's 2 TCs
        ),
        cost_estimate=cost,
    )(t2, w2, b2)

    # (D, N_pad) -> (N, D) to match the PyTorch module's output layout.
    # (If the consumer accepts (D, N) directly, this transpose can be skipped.)
    return out_t[:, :n].T


if __name__ == "__main__":
    # Module config (small, consistent with the forward): D = 32 time features.
    dimension = 32

    # Deterministic parameter init exactly as in TimeEncode.__init__:
    #   weight = 1 / 10**linspace(0, 9, D) (shape (D,1) -> squeezed), bias = 0.
    w_np = (1.0 / (10.0 ** np.linspace(0, 9, dimension))).astype(np.float32)
    b_np = np.zeros((dimension,), dtype=np.float32)
    w = jnp.asarray(w_np)
    b = jnp.asarray(b_np)

    key = jax.random.PRNGKey(0)

    # Case 1: N = 512, small lane tile so the grid has 2 parallel steps.
    n = 512
    t = jax.random.uniform(key, (n,), dtype=jnp.float32, minval=0.0, maxval=1000.0)
    out = jax.block_until_ready(time_encode(t, w, b, block_lanes=256))
    ref = jnp.cos(t[:, None] * w[None, :] + b[None, :])
    assert out.shape == (n, dimension)
    np.testing.assert_allclose(np.asarray(out), np.asarray(ref), rtol=1e-5, atol=1e-4)

    # Case 2: ragged N = 300 (exercises the padding path + default tiling).
    n2 = 300
    t2 = jax.random.uniform(jax.random.PRNGKey(1), (n2,), dtype=jnp.float32,
                            minval=0.0, maxval=1000.0)
    out2 = jax.block_until_ready(time_encode(t2, w, b))
    ref2 = jnp.cos(t2[:, None] * w[None, :] + b[None, :])
    assert out2.shape == (n2, dimension)
    np.testing.assert_allclose(np.asarray(out2), np.asarray(ref2), rtol=1e-5, atol=1e-4)

    print("KERNEL_OK")
</pallas_src>

<mosaic_0001>
module attributes {stable_mosaic.version = 11 : i64} {
  func.func @time_encode_kernel(%arg0: i32, %arg1: memref<1x256xf32, #tpu.memory_space<vmem>>, %arg2: memref<32x1xf32, #tpu.memory_space<vmem>>, %arg3: memref<32x1xf32, #tpu.memory_space<vmem>>, %arg4: memref<32x256xf32, #tpu.memory_space<vmem>>) attributes {dimension_semantics = [#tpu.dimension_semantics<parallel>], iteration_bounds = array<i64: 2>, scalar_prefetch = 0 : i64, scratch_operands = 0 : i64, tpu.core_type = #tpu.core_type<tc>, window_params = [{transform_indices = @transform_0, window_bounds = array<i64: 1, 256>}, {pipeline_mode = #tpu.pipeline_mode<synchronous>, transform_indices = @transform_1, window_bounds = array<i64: 32, 1>}, {pipeline_mode = #tpu.pipeline_mode<synchronous>, transform_indices = @transform_2, window_bounds = array<i64: 32, 1>}, {transform_indices = @transform_3, window_bounds = array<i64: 32, 256>}]} {
    %c0 = arith.constant 0 : index
    %c0_0 = arith.constant 0 : index
    %0 = vector.load %arg1[%c0, %c0_0] : memref<1x256xf32, #tpu.memory_space<vmem>>, vector<1x256xf32>
    %c0_1 = arith.constant 0 : index
    %c0_2 = arith.constant 0 : index
    %1 = vector.load %arg2[%c0_1, %c0_2] : memref<32x1xf32, #tpu.memory_space<vmem>>, vector<32x1xf32>
    %2 = vector.broadcast %0 : vector<1x256xf32> to vector<32x256xf32>
    %3 = vector.broadcast %1 : vector<32x1xf32> to vector<32x256xf32>
    %4 = arith.mulf %2, %3 : vector<32x256xf32>
    %c0_3 = arith.constant 0 : index
    %c0_4 = arith.constant 0 : index
    %5 = vector.load %arg3[%c0_3, %c0_4] : memref<32x1xf32, #tpu.memory_space<vmem>>, vector<32x1xf32>
    %6 = vector.broadcast %5 : vector<32x1xf32> to vector<32x256xf32>
    %7 = arith.addf %4, %6 : vector<32x256xf32>
    %8 = math.cos %7 : vector<32x256xf32>
    %c0_5 = arith.constant 0 : index
    %c0_6 = arith.constant 0 : index
    %9 = vector.load %arg4[%c0_5, %c0_6] : memref<32x256xf32, #tpu.memory_space<vmem>>, vector<32x256xf32>
    tpu.vector_store %arg4[%c0_5, %c0_6], %8 {strides = array<i32>} : memref<32x256xf32, #tpu.memory_space<vmem>>, vector<32x256xf32>,
    return
  }
  func.func @transform_0(%arg0: i32) -> (i32, i32) {
    %c0_i32 = arith.constant 0 : i32
    %c0_i32_0 = arith.constant 0 : i32
    return %c0_i32, %arg0 : i32, i32
  }
  func.func @transform_1(%arg0: i32) -> (i32, i32) {
    %c0_i32 = arith.constant 0 : i32
    %c0_i32_0 = arith.constant 0 : i32
    %c0_i32_1 = arith.constant 0 : i32
    return %c0_i32, %c0_i32_0 : i32, i32
  }
  func.func @transform_2(%arg0: i32) -> (i32, i32) {
    %c0_i32 = arith.constant 0 : i32
    %c0_i32_0 = arith.constant 0 : i32
    %c0_i32_1 = arith.constant 0 : i32
    return %c0_i32, %c0_i32_0 : i32, i32
  }
  func.func @transform_3(%arg0: i32) -> (i32, i32) {
    %c0_i32 = arith.constant 0 : i32
    %c0_i32_0 = arith.constant 0 : i32
    return %c0_i32, %arg0 : i32, i32
  }
}

</mosaic_0001>

<llo_original>
// kernel: tpu_custom_call.1
$region0: #{tpu_custom_call.1}
  #allocation0 [shape = 'u32[]', space=smem, size = 0x4, offset = 0x4, fixed_abs, tag = 'smem constant byte address 0x4 - core index']
  #allocation1 [shape = 'u32[144,128]{1,0:T(1,128)}', space=vmem, size = 0x12000, scoped, tag = 'internal scratch']
  %s0 = inlined_call_operand.vmem [shape: f32[1,512], index: 0, kind: input, shape index: {}]
  %s1 = inlined_call_operand.vmem [shape: f32[32,1], index: 1, kind: input, shape index: {}]
  %s2 = inlined_call_operand.vmem [shape: f32[32,1], index: 2, kind: input, shape index: {}]
  %s3 = inlined_call_operand.hbm [shape: f32[32,512], index: 3, kind: output, shape index: {}]
  %s4 = sld [smem:[#allocation0]]
  $region45: #{tpu_custom_call.1} parent=0
    _
  %s6 = ssub.s32 1, %s4
  %s7 = scalar_select 0, %s6, %s4
  $region1: #{tpu_custom_call.1} parent=0
    #allocation2 [shape = 'u8[65536]{0}', space=vmem, size = 0x10000, scoped, tag = 'output window, operand 0']
    #allocation3 [shape = 's32[2]{0}', space=sflag, size = 0x8, scoped, tag = 'scoped memory for tpu_custom_call.1']
    %8 = vsyncpa [#allocation3], 0
    %s9 = scalar_lea.sflag [#allocation3], 1
    %10 = vsyncpa %s9, 0
    loop: start=0, step=1, limit=4
    $region2: #{tpu_custom_call.1} parent=1 // loop_pre_header
      _
    $region3: #{tpu_custom_call.1} parent=1 // loop_header
      %s12 = sphi 0, %s16
      %p13 = scmp.ge.s32.totalorder %s12, 4
      %s22 = sphi 0, %s24
      %s25 = sphi 0, %s22
      %s26 = sphi 0, %s25
      %s42 = sphi 0, %s26
      %s46 = sphi 0, %s46
      %s48 = sphi 0, %s46
      %s49 = sphi 0, %s48
      %s63 = sphi 0, %s49
      %s67 = sphi 0, %s67
      %s69 = sphi 0, %s67
      %s70 = sphi 0, %s69
      %s84 = sphi 0, %s70
      %s90 = sphi 0, %s92
      %s93 = sphi 0, %s90
      %s94 = sphi 0, %s93
      %s110 = sphi 0, %s94
    $region4: #{tpu_custom_call.1} parent=1 // loop_header_branch
      %15 = sbr.rel (%p13) target = $region8
    $region5: #{tpu_custom_call.1} parent=1 // loop_body
      %s17 = ssub.s32 %s12, 1
      %s18 = ssub.s32 %s12, 2
      %s19 = sadd.s32 %s12, 1
      %s20 = ssub.s32 %s12, %s19
      %p21 = scmp.eq.s32.totalorder %s20, 0
      %s23 = sadd.s32 %s22, 1
      %s24 = scalar_select %p21, %s22, %s23
      %p27 = pneg %p21
      %p28 = scmp.eq.s32.totalorder %s12, 1
      %p29 = por %p27, %p28
      %p30 = scmp.ne.s32.totalorder %s22, %s25
      %p31 = scmp.eq.s32.totalorder %s12, 0
      %p32 = por %p30, %p31
      %p33 = scmp.ne.s32.totalorder %s22, %s25
      %p34 = scmp.eq.s32.totalorder %s17, 1
      %p35 = por %p33, %p34
      %p36 = scmp.ne.s32.totalorder %s25, %s26
      %p37 = scmp.eq.s32.totalorder %s17, 0
      %p38 = por %p36, %p37
      %p39 = scmp.ne.s32.totalorder %s25, %s26
      %p40 = scmp.eq.s32.totalorder %s18, 1
      %p41 = por %p39, %p40
      %p43 = scmp.ne.s32.totalorder %s26, %s42
      %p44 = scmp.eq.s32.totalorder %s18, 0
      %p45 = por %p43, %p44
      %s47 = sadd.s32 %s46, 1
      %p50 = scmp.eq.s32.totalorder %s12, 1
      %p51 = scmp.ne.s32.totalorder %s46, %s48
      %p52 = scmp.eq.s32.totalorder %s12, 0
      %p53 = por %p51, %p52
      %p54 = scmp.ne.s32.totalorder %s46, %s48
      %p55 = scmp.eq.s32.totalorder %s17, 1
      %p56 = por %p54, %p55
      %p57 = scmp.ne.s32.totalorder %s48, %s49
      %p58 = scmp.eq.s32.totalorder %s17, 0
      %p59 = por %p57, %p58
      %p60 = scmp.ne.s32.totalorder %s48, %s49
      %p61 = scmp.eq.s32.totalorder %s18, 1
      %p62 = por %p60, %p61
      %p64 = scmp.ne.s32.totalorder %s49, %s63
      %p65 = scmp.eq.s32.totalorder %s18, 0
      %p66 = por %p64, %p65
      %s68 = sadd.s32 %s67, 1
      %p71 = scmp.eq.s32.totalorder %s12, 1
      %p72 = scmp.ne.s32.totalorder %s67, %s69
      %p73 = scmp.eq.s32.totalorder %s12, 0
      %p74 = por %p72, %p73
      %p75 = scmp.ne.s32.totalorder %s67, %s69
      %p76 = scmp.eq.s32.totalorder %s17, 1
      %p77 = por %p75, %p76
      %p78 = scmp.ne.s32.totalorder %s69, %s70
      %p79 = scmp.eq.s32.totalorder %s17, 0
      %p80 = por %p78, %p79
      %p81 = scmp.ne.s32.totalorder %s69, %s70
      %p82 = scmp.eq.s32.totalorder %s18, 1
      %p83 = por %p81, %p82
      %p85 = scmp.ne.s32.totalorder %s70, %s84
      %p86 = scmp.eq.s32.totalorder %s18, 0
      %p87 = por %p85, %p86
      %s88 = ssub.s32 %s12, %s19
      %p89 = scmp.eq.s32.totalorder %s88, 0
      %s91 = sadd.s32 %s90, 1
      %s92 = scalar_select %p89, %s90, %s91
      %p95 = pneg %p89
      %p96 = scmp.eq.s32.totalorder %s12, 1
      %p97 = por %p95, %p96
      %p98 = scmp.ne.s32.totalorder %s90, %s93
      %p99 = scmp.eq.s32.totalorder %s12, 0
      %p100 = por %p98, %p99
      %p101 = scmp.ne.s32.totalorder %s90, %s93
      %p102 = scmp.eq.s32.totalorder %s17, 1
      %p103 = por %p101, %p102
      %p104 = scmp.ne.s32.totalorder %s93, %s94
      %p105 = scmp.eq.s32.totalorder %s17, 0
      %p106 = por %p104, %p105
      %p107 = scmp.ne.s32.totalorder %s93, %s94
      %p108 = scmp.eq.s32.totalorder %s18, 1
      %p109 = por %p107, %p108
      %p111 = scmp.ne.s32.totalorder %s94, %s110
      %p112 = scmp.eq.s32.totalorder %s18, 0
      %p113 = por %p111, %p112
      %p114 = scmp.le.s32.totalorder 1, %s12
      %p115 = scmp.lt.s32.totalorder %s12, 3
      %p116 = pnand %p114, %p115
      %p117 = pneg %p116
      // Predicated region
      $region9: #{tpu_custom_call.1} parent=5 // pred_check
        _
      $region10: #{tpu_custom_call.1} parent=5 // pred_check_branch
        %119 = sbr.rel (%p116) target = $region12
      $region11: #{tpu_custom_call.1} parent=5 // pred_region
        %s120 = ssub.s32 %s12, 1
        // Predicated region
        $region13: #{tpu_custom_call.1} parent=11 // pred_check
          %p121 = pneg %p59
        $region14: #{tpu_custom_call.1} parent=11 // pred_check_branch
          %123 = sbr.rel (%p121) target = $region16
        $region15: #{tpu_custom_call.1} parent=11 // pred_region
          _
        $region16: #{tpu_custom_call.1} parent=11 // pred_fallthru
          _
        // Predicated region
        $region17: #{tpu_custom_call.1} parent=11 // pred_check
          %p124 = pneg %p80
        $region18: #{tpu_custom_call.1} parent=11 // pred_check_branch
          %126 = sbr.rel (%p124) target = $region20
        $region19: #{tpu_custom_call.1} parent=11 // pred_region
          _
        $region20: #{tpu_custom_call.1} parent=11 // pred_fallthru
          _
      $region12: #{tpu_custom_call.1} parent=5 // pred_fallthru
        _
      %p127 = scmp.lt.s32.totalorder %s12, 2
      // Predicated region
      $region21: #{tpu_custom_call.1} parent=5 // pred_check
        %p128 = pneg %p127
      $region22: #{tpu_custom_call.1} parent=5 // pred_check_branch
        %130 = sbr.rel (%p128) target = $region24
      $region23: #{tpu_custom_call.1} parent=5 // pred_region
        // Predicated region
        $region25: #{tpu_custom_call.1} parent=23 // pred_check
          %p131 = pneg %p32
        $region26: #{tpu_custom_call.1} parent=23 // pred_check_branch
          %133 = sbr.rel (%p131) target = $region28
        $region27: #{tpu_custom_call.1} parent=23 // pred_region
          %s134 = smul.u32 2, %s12
          %p135 = scmp.lt.s32.totalorder %s134, 3
          %s136 = scalar_select %p135, %s134, 3
          %s137 = scalar_lea.vmem %s0, %s136
          %s138 = smul.u32 2, %s12
        $region28: #{tpu_custom_call.1} parent=23 // pred_fallthru
          _
      $region24: #{tpu_custom_call.1} parent=5 // pred_fallthru
        _
      %p139 = scmp.le.s32.totalorder 1, %s12
      %p140 = scmp.lt.s32.totalorder %s12, 3
      %p141 = pnand %p139, %p140
      %p142 = pneg %p141
      // Predicated region
      $region29: #{tpu_custom_call.1} parent=5 // pred_check
        _
      $region30: #{tpu_custom_call.1} parent=5 // pred_check_branch
        %144 = sbr.rel (%p141) target = $region32
      $region31: #{tpu_custom_call.1} parent=5 // pred_region
        %s145 = ssub.s32 %s12, 1
        %s146 = smul.u32 2, %s17
        %p147 = scmp.lt.s32.totalorder %s146, 3
        %s148 = scalar_select %p147, %s146, 3
        %s149 = scalar_lea.vmem %s0, %s148
        %p150 = pneg %p38
        %p151 = pneg %p35
        %p152 = pneg %p59
        %p153 = pneg %p56
        %p154 = pneg %p80
        %p155 = pneg %p77
        %p156 = pneg %p106
        %p157 = pneg %p103
        %s158 = sand.u32 %s93, 1
        %s159 = scalar_lea.sflag [#allocation3], %s158
        %s160 = sand.u32 %s93, 1
        %s161 = smul.addr %s160, 64
        %s162 = scalar_lea.vmem [#allocation2], %s161
        %s163 = smul.u32 2, %s17
        %p164 = scmp.lt.s32.totalorder %s163, 3
        %s165 = scalar_select %p164, %s163, 3
        %s166 = scalar_lea.vmem %s0, %s165
        %s167 = smul.u32 2, %s17
        %s168 = smul.u32 2, %s17
        %v169 = vld [vmem:[%s166] sm:$0x3]
        %v170 = vld [vmem:[%s1] sm:$0xff]
        %v171 = vld [vmem:[%s1 + $0x8] sm:$0xff]
        %v172 = vld [vmem:[%s1 + $0x10] sm:$0xff]
        %v173 = vld [vmem:[%s1 + $0x18] sm:$0xff]
        %v175 = vlaneseq
        %v176 = vshrl.u32 %v175, 7
        %v177 = vsub.s32 0, %v176
        %v178 = vrot.slane %v169, %v177
        %v179 = vlaneseq
        %v180 = vshrl.u32 %v179, 7
        %v181 = vsub.s32 1, %v180
        %v182 = vrot.slane %v169, %v181
        %186 = vset.pattern.permute.xlu0 0
        %187 = vperm.xlu0 %186, %v170
        %v188 = vpop.permute.xlu0 %187
        %191 = vset.pattern.permute.xlu0 0
        %192 = vperm.xlu0 %191, %v171
        %v193 = vpop.permute.xlu0 %192
        %196 = vset.pattern.permute.xlu0 0
        %197 = vperm.xlu0 %196, %v172
        %v198 = vpop.permute.xlu0 %197
        %201 = vset.pattern.permute.xlu0 0
        %202 = vperm.xlu0 %201, %v173
        %v203 = vpop.permute.xlu0 %202
        %v205 = vmul.f32 %v178, %v188
        %v206 = vmul.f32 %v182, %v188
        %v207 = vmul.f32 %v178, %v193
        %v208 = vmul.f32 %v182, %v193
        %v209 = vmul.f32 %v178, %v198
        %v210 = vmul.f32 %v182, %v198
        %v211 = vmul.f32 %v178, %v203
        %v212 = vmul.f32 %v182, %v203
        %v213 = vld [vmem:[%s2] sm:$0xff]
        %v214 = vld [vmem:[%s2 + $0x8] sm:$0xff]
        %v215 = vld [vmem:[%s2 + $0x10] sm:$0xff]
        %v216 = vld [vmem:[%s2 + $0x18] sm:$0xff]
        %218 = vset.pattern.permute.xlu0 0
        %219 = vperm.xlu0 %218, %v213
        %v220 = vpop.permute.xlu0 %219
        %223 = vset.pattern.permute.xlu0 0
        %224 = vperm.xlu0 %223, %v214
        %v225 = vpop.permute.xlu0 %224
        %228 = vset.pattern.permute.xlu0 0
        %229 = vperm.xlu0 %228, %v215
        %v230 = vpop.permute.xlu0 %229
        %233 = vset.pattern.permute.xlu0 0
        %234 = vperm.xlu0 %233, %v216
        %v235 = vpop.permute.xlu0 %234
        %v237 = vadd.f32 %v205, %v220
        %v238 = vadd.f32 %v206, %v220
        %v239 = vadd.f32 %v207, %v225
        %v240 = vadd.f32 %v208, %v225
        %v241 = vadd.f32 %v209, %v230
        %v242 = vadd.f32 %v210, %v230
        %v243 = vadd.f32 %v211, %v235
        %v244 = vadd.f32 %v212, %v235
        %v245 = vand.u32 2147483647, %v237
        %vm246 = vcmp.le.f32.partialorder %v245, 0.7853982
        %vm247 = vcmp.lt.s32.totalorder %v237, 0
        %v248 = vand.u32 %v237, 2139095040
        %v249 = vshrl.u32 %v248, 23
        %v250 = vsub.s32 %v249, 127
        %v251 = vand.u32 2147483647, %v237
        %v252 = vand.u32 %v251, 8388607
        %v253 = vor.u32 %v252, 8388608
        %v254 = vsub.s32 0, %v253
        %v255 = vadd.s32 %v250, 1
        %vm256 = vcmp.gt.s32.totalorder %v255, 0
        %v257 = vsel %vm256, %v255, 0
        %v258 = vshrl.u32 %v257, 5
        %v259 = vand.u32 %v257, 31
        %v260 = vsub.s32 32, %v259
        %v261 = vshrl.u32 683565275, %v260
        %v262 = vshll.u32 683565275, %v259
        %v263 = vshrl.u32 2475754826, %v260
        %v264 = vor.u32 %v262, %v263
        %v265 = vshll.u32 2475754826, %v259
        %v266 = vshrl.u32 2131351028, %v260
        %v267 = vor.u32 %v265, %v266
        %v268 = vshll.u32 2131351028, %v259
        %v269 = vshrl.u32 2102212464, %v260
        %v270 = vor.u32 %v268, %v269
        %v271 = vshll.u32 2102212464, %v259
        %v272 = vshrl.u32 920167782, %v260
        %v273 = vor.u32 %v271, %v272
        %v274 = vshll.u32 920167782, %v259
        %v275 = vshrl.u32 1326507024, %v260
        %v276 = vor.u32 %v274, %v275
        %vm277 = vcmp.lt.s32.totalorder %v258, 1
        %vm278 = vcmp.lt.s32.totalorder %v258, 2
        %vm279 = vcmp.lt.s32.totalorder %v258, 3
        %vm280 = vcmp.lt.s32.totalorder %v258, 4
        %v281 = vsel %vm277, %v261, %v264
        %v282 = vsel %vm280, %v270, 2102212464
        %v283 = vsel %vm279, %v267, %v282
        %v284 = vsel %vm278, %v281, %v283
        %v285 = vsel %vm277, %v264, %v267
        %v286 = vsel %vm280, %v273, 920167782
        %v287 = vsel %vm279, %v270, %v286
        %v288 = vsel %vm278, %v285, %v287
        %v289 = vsel %vm277, %v267, %v270
        %v290 = vsel %vm280, %v276, 1326507024
        %v291 = vsel %vm279, %v273, %v290
        %v292 = vsel %vm278, %v289, %v291
        %v293 = vshll.u32 %v253, 8
        %v294 = vmul.u32.u64.compose %v293, %v292
        %v295 = vextract.low.u32 %v294
        %v296 = vextract.high.u32 %v294
        %v297 = vmul.u32.u64.compose %v293, %v288
        %v298 = vextract.low.u32 %v297
        %v299 = vextract.high.u32 %v297
        %v300 = vmul.u32 %v293, %v284
        %v301 = vadd.s32 %v296, %v298
        %vm302 = vc.u32 %v296, %v298
        %v303 = vadd.s32 %v299, 1
        %v304 = vsel %vm302, %v303, %v299
        %v305 = vadd.s32 %v300, %v304
        %v306 = vadd.s32 %v305, 536870912
        %v307 = vshrl.u32 %v306, 30
        %v308 = vshll.u32 %v307, 30
        %v309 = vsub.s32 %v305, %v308
        %vm310 = vcmp.lt.s32.totalorder %v309, 0
        %v311 = vsub.s32 0, %v309
        %v312 = vsel %vm310, %v311, %v309
        %v313 = vclz %v312
        %v314 = vsub.s32 %v313, 2
        %vm315 = vcmp.gt.s32.totalorder 0, %v314
        %v316 = vsel %vm315, 0, %v314
        %v317 = vsub.s32 32, %v316
        %v318 = vshll.u32 %v309, %v316
        %v319 = vshrl.u32 %v301, %v317
        %v320 = vor.u32 %v318, %v319
        %v321 = vsub.s32 4294967266, %v316
        %v322 = vadd.s32 %v321, 127
        %v323 = vshll.u32 %v322, 23
        %v324 = vor.u32 4788187, %v323
        %v325 = vand.u32 2147483647, %v324
        %v327 = vcvt.s32.f32 %v320
        %v328 = vmul.f32 %v327, %v325
        %v329 = vxor.u32 %v328, 2147483648
        %v330 = vsel %vm247, %v329, %v328
        %v331 = vsub.s32 4, %v307
        %v332 = vsel %vm247, %v331, %v307
        %v333 = vsel %vm246, %v237, %v330
        %v334 = vsel %vm246, 0, %v332
        %v335 = vcosq.f32.pop %v333
        %v336 = vsinq.f32.pop %v333
        %vm337 = vweird.f32 %v237
        %v338 = vand.u32 %v334, 3
        %vm339 = vcmp.lt.s32.totalorder %v338, 2
        %vm340 = vcmp.eq.s32.totalorder %v338, 0
        %v341 = vxor.u32 %v336, 2147483648
        %v342 = vsel %vm340, %v335, %v341
        %vm343 = vcmp.eq.s32.totalorder %v338, 2
        %v344 = vxor.u32 %v335, 2147483648
        %v345 = vsel %vm343, %v344, %v336
        %v346 = vsel %vm339, %v342, %v345
        %v347 = vsel %vm337, nan, %v346
        %v348 = vand.u32 2147483647, %v238
        %vm349 = vcmp.le.f32.partialorder %v348, 0.7853982
        %vm350 = vcmp.lt.s32.totalorder %v238, 0
        %v351 = vand.u32 %v238, 2139095040
        %v352 = vshrl.u32 %v351, 23
        %v353 = vsub.s32 %v352, 127
        %v354 = vand.u32 2147483647, %v238
        %v355 = vand.u32 %v354, 8388607
        %v356 = vor.u32 %v355, 8388608
        %v357 = vsub.s32 0, %v356
        %v358 = vadd.s32 %v353, 1
        %vm359 = vcmp.gt.s32.totalorder %v358, 0
        %v360 = vsel %vm359, %v358, 0
        %v361 = vshrl.u32 %v360, 5
        %v362 = vand.u32 %v360, 31
        %v363 = vsub.s32 32, %v362
        %v364 = vshrl.u32 683565275, %v363
        %v365 = vshll.u32 683565275, %v362
        %v366 = vshrl.u32 2475754826, %v363
        %v367 = vor.u32 %v365, %v366
        %v368 = vshll.u32 2475754826, %v362
        %v369 = vshrl.u32 2131351028, %v363
        %v370 = vor.u32 %v368, %v369
        %v371 = vshll.u32 2131351028, %v362
        %v372 = vshrl.u32 2102212464, %v363
        %v373 = vor.u32 %v371, %v372
        %v374 = vshll.u32 2102212464, %v362
        %v375 = vshrl.u32 920167782, %v363
        %v376 = vor.u32 %v374, %v375
        %v377 = vshll.u32 920167782, %v362
        %v378 = vshrl.u32 1326507024, %v363
        %v379 = vor.u32 %v377, %v378
        %vm380 = vcmp.lt.s32.totalorder %v361, 1
        %vm381 = vcmp.lt.s32.totalorder %v361, 2
        %vm382 = vcmp.lt.s32.totalorder %v361, 3
        %vm383 = vcmp.lt.s32.totalorder %v361, 4
        %v384 = vsel %vm380, %v364, %v367
        %v385 = vsel %vm383, %v373, 2102212464
        %v386 = vsel %vm382, %v370, %v385
        %v387 = vsel %vm381, %v384, %v386
        %v388 = vsel %vm380, %v367, %v370
        %v389 = vsel %vm383, %v376, 920167782
        %v390 = vsel %vm382, %v373, %v389
        %v391 = vsel %vm381, %v388, %v390
        %v392 = vsel %vm380, %v370, %v373
        %v393 = vsel %vm383, %v379, 1326507024
        %v394 = vsel %vm382, %v376, %v393
        %v395 = vsel %vm381, %v392, %v394
        %v396 = vshll.u32 %v356, 8
        %v397 = vmul.u32.u64.compose %v396, %v395
        %v398 = vextract.low.u32 %v397
        %v399 = vextract.high.u32 %v397
        %v400 = vmul.u32.u64.compose %v396, %v391
        %v401 = vextract.low.u32 %v400
        %v402 = vextract.high.u32 %v400
        %v403 = vmul.u32 %v396, %v387
        %v404 = vadd.s32 %v399, %v401
        %vm405 = vc.u32 %v399, %v401
        %v406 = vadd.s32 %v402, 1
        %v407 = vsel %vm405, %v406, %v402
        %v408 = vadd.s32 %v403, %v407
        %v409 = vadd.s32 %v408, 536870912
        %v410 = vshrl.u32 %v409, 30
        %v411 = vshll.u32 %v410, 30
        %v412 = vsub.s32 %v408, %v411
        %vm413 = vcmp.lt.s32.totalorder %v412, 0
        %v414 = vsub.s32 0, %v412
        %v415 = vsel %vm413, %v414, %v412
        %v416 = vclz %v415
        %v417 = vsub.s32 %v416, 2
        %vm418 = vcmp.gt.s32.totalorder 0, %v417
        %v419 = vsel %vm418, 0, %v417
        %v420 = vsub.s32 32, %v419
        %v421 = vshll.u32 %v412, %v419
        %v422 = vshrl.u32 %v404, %v420
        %v423 = vor.u32 %v421, %v422
        %v424 = vsub.s32 4294967266, %v419
        %v425 = vadd.s32 %v424, 127
        %v426 = vshll.u32 %v425, 23
        %v427 = vor.u32 4788187, %v426
        %v428 = vand.u32 2147483647, %v427
        %v430 = vcvt.s32.f32 %v423
        %v431 = vmul.f32 %v430, %v428
        %v432 = vxor.u32 %v431, 2147483648
        %v433 = vsel %vm350, %v432, %v431
        %v434 = vsub.s32 4, %v410
        %v435 = vsel %vm350, %v434, %v410
        %v436 = vsel %vm349, %v238, %v433
        %v437 = vsel %vm349, 0, %v435
        %v438 = vcosq.f32.pop %v436
        %v439 = vsinq.f32.pop %v436
        %vm440 = vweird.f32 %v238
        %v441 = vand.u32 %v437, 3
        %vm442 = vcmp.lt.s32.totalorder %v441, 2
        %vm443 = vcmp.eq.s32.totalorder %v441, 0
        %v444 = vxor.u32 %v439, 2147483648
        %v445 = vsel %vm443, %v438, %v444
        %vm446 = vcmp.eq.s32.totalorder %v441, 2
        %v447 = vxor.u32 %v438, 2147483648
        %v448 = vsel %vm446, %v447, %v439
        %v449 = vsel %vm442, %v445, %v448
        %v450 = vsel %vm440, nan, %v449
        %v451 = vand.u32 2147483647, %v239
        %vm452 = vcmp.le.f32.partialorder %v451, 0.7853982
        %vm453 = vcmp.lt.s32.totalorder %v239, 0
        %v454 = vand.u32 %v239, 2139095040
        %v455 = vshrl.u32 %v454, 23
        %v456 = vsub.s32 %v455, 127
        %v457 = vand.u32 2147483647, %v239
        %v458 = vand.u32 %v457, 8388607
        %v459 = vor.u32 %v458, 8388608
        %v460 = vsub.s32 0, %v459
        %v461 = vadd.s32 %v456, 1
        %vm462 = vcmp.gt.s32.totalorder %v461, 0
        %v463 = vsel %vm462, %v461, 0
        %v464 = vshrl.u32 %v463, 5
        %v465 = vand.u32 %v463, 31
        %v466 = vsub.s32 32, %v465
        %v467 = vshrl.u32 683565275, %v466
        %v468 = vshll.u32 683565275, %v465
        %v469 = vshrl.u32 2475754826, %v466
        %v470 = vor.u32 %v468, %v469
        %v471 = vshll.u32 2475754826, %v465
        %v472 = vshrl.u32 2131351028, %v466
        %v473 = vor.u32 %v471, %v472
        %v474 = vshll.u32 2131351028, %v465
        %v475 = vshrl.u32 2102212464, %v466
        %v476 = vor.u32 %v474, %v475
        %v477 = vshll.u32 2102212464, %v465
        %v478 = vshrl.u32 920167782, %v466
        %v479 = vor.u32 %v477, %v478
        %v480 = vshll.u32 920167782, %v465
        %v481 = vshrl.u32 1326507024, %v466
        %v482 = vor.u32 %v480, %v481
        %vm483 = vcmp.lt.s32.totalorder %v464, 1
        %vm484 = vcmp.lt.s32.totalorder %v464, 2
        %vm485 = vcmp.lt.s32.totalorder %v464, 3
        %vm486 = vcmp.lt.s32.totalorder %v464, 4
        %v487 = vsel %vm483, %v467, %v470
        %v488 = vsel %vm486, %v476, 2102212464
        %v489 = vsel %vm485, %v473, %v488
        %v490 = vsel %vm484, %v487, %v489
        %v491 = vsel %vm483, %v470, %v473
        %v492 = vsel %vm486, %v479, 920167782
        %v493 = vsel %vm485, %v476, %v492
        %v494 = vsel %vm484, %v491, %v493
        %v495 = vsel %vm483, %v473, %v476
        %v496 = vsel %vm486, %v482, 1326507024
        %v497 = vsel %vm485, %v479, %v496
        %v498 = vsel %vm484, %v495, %v497
        %v499 = vshll.u32 %v459, 8
        %v500 = vmul.u32.u64.compose %v499, %v498
        %v501 = vextract.low.u32 %v500
        %v502 = vextract.high.u32 %v500
        %v503 = vmul.u32.u64.compose %v499, %v494
        %v504 = vextract.low.u32 %v503
        %v505 = vextract.high.u32 %v503
        %v506 = vmul.u32 %v499, %v490
        %v507 = vadd.s32 %v502, %v504
        %vm508 = vc.u32 %v502, %v504
        %v509 = vadd.s32 %v505, 1
        %v510 = vsel %vm508, %v509, %v505
        %v511 = vadd.s32 %v506, %v510
        %v512 = vadd.s32 %v511, 536870912
        %v513 = vshrl.u32 %v512, 30
        %v514 = vshll.u32 %v513, 30
        %v515 = vsub.s32 %v511, %v514
        %vm516 = vcmp.lt.s32.totalorder %v515, 0
        %v517 = vsub.s32 0, %v515
        %v518 = vsel %vm516, %v517, %v515
        %v519 = vclz %v518
        %v520 = vsub.s32 %v519, 2
        %vm521 = vcmp.gt.s32.totalorder 0, %v520
        %v522 = vsel %vm521, 0, %v520
        %v523 = vsub.s32 32, %v522
        %v524 = vshll.u32 %v515, %v522
        %v525 = vshrl.u32 %v507, %v523
        %v526 = vor.u32 %v524, %v525
        %v527 = vsub.s32 4294967266, %v522
        %v528 = vadd.s32 %v527, 127
        %v529 = vshll.u32 %v528, 23
        %v530 = vor.u32 4788187, %v529
        %v531 = vand.u32 2147483647, %v530
        %v533 = vcvt.s32.f32 %v526
        %v534 = vmul.f32 %v533, %v531
        %v535 = vxor.u32 %v534, 2147483648
        %v536 = vsel %vm453, %v535, %v534
        %v537 = vsub.s32 4, %v513
        %v538 = vsel %vm453, %v537, %v513
        %v539 = vsel %vm452, %v239, %v536
        %v540 = vsel %vm452, 0, %v538
        %v541 = vcosq.f32.pop %v539
        %v542 = vsinq.f32.pop %v539
        %vm543 = vweird.f32 %v239
        %v544 = vand.u32 %v540, 3
        %vm545 = vcmp.lt.s32.totalorder %v544, 2
        %vm546 = vcmp.eq.s32.totalorder %v544, 0
        %v547 = vxor.u32 %v542, 2147483648
        %v548 = vsel %vm546, %v541, %v547
        %vm549 = vcmp.eq.s32.totalorder %v544, 2
        %v550 = vxor.u32 %v541, 2147483648
        %v551 = vsel %vm549, %v550, %v542
        %v552 = vsel %vm545, %v548, %v551
        %v553 = vsel %vm543, nan, %v552
        %v554 = vand.u32 2147483647, %v240
        %vm555 = vcmp.le.f32.partialorder %v554, 0.7853982
        %vm556 = vcmp.lt.s32.totalorder %v240, 0
        %v557 = vand.u32 %v240, 2139095040
        %v558 = vshrl.u32 %v557, 23
        %v559 = vsub.s32 %v558, 127
        %v560 = vand.u32 2147483647, %v240
        %v561 = vand.u32 %v560, 8388607
        %v562 = vor.u32 %v561, 8388608
        %v563 = vsub.s32 0, %v562
        %v564 = vadd.s32 %v559, 1
        %vm565 = vcmp.gt.s32.totalorder %v564, 0
        %v566 = vsel %vm565, %v564, 0
        %v567 = vshrl.u32 %v566, 5
        %v568 = vand.u32 %v566, 31
        %v569 = vsub.s32 32, %v568
        %v570 = vshrl.u32 683565275, %v569
        %v571 = vshll.u32 683565275, %v568
        %v572 = vshrl.u32 2475754826, %v569
        %v573 = vor.u32 %v571, %v572
        %v574 = vshll.u32 2475754826, %v568
        %v575 = vshrl.u32 2131351028, %v569
        %v576 = vor.u32 %v574, %v575
        %v577 = vshll.u32 2131351028, %v568
        %v578 = vshrl.u32 2102212464, %v569
        %v579 = vor.u32 %v577, %v578
        %v580 = vshll.u32 2102212464, %v568
        %v581 = vshrl.u32 920167782, %v569
        %v582 = vor.u32 %v580, %v581
        %v583 = vshll.u32 920167782, %v568
        %v584 = vshrl.u32 1326507024, %v569
        %v585 = vor.u32 %v583, %v584
        %vm586 = vcmp.lt.s32.totalorder %v567, 1
        %vm587 = vcmp.lt.s32.totalorder %v567, 2
        %vm588 = vcmp.lt.s32.totalorder %v567, 3
        %vm589 = vcmp.lt.s32.totalorder %v567, 4
        %v590 = vsel %vm586, %v570, %v573
        %v591 = vsel %vm589, %v579, 2102212464
        %v592 = vsel %vm588, %v576, %v591
        %v593 = vsel %vm587, %v590, %v592
        %v594 = vsel %vm586, %v573, %v576
        %v595 = vsel %vm589, %v582, 920167782
        %v596 = vsel %vm588, %v579, %v595
        %v597 = vsel %vm587, %v594, %v596
        %v598 = vsel %vm586, %v576, %v579
        %v599 = vsel %vm589, %v585, 1326507024
        %v600 = vsel %vm588, %v582, %v599
        %v601 = vsel %vm587, %v598, %v600
        %v602 = vshll.u32 %v562, 8
        %v603 = vmul.u32.u64.compose %v602, %v601
        %v604 = vextract.low.u32 %v603
        %v605 = vextract.high.u32 %v603
        %v606 = vmul.u32.u64.compose %v602, %v597
        %v607 = vextract.low.u32 %v606
        %v608 = vextract.high.u32 %v606
        %v609 = vmul.u32 %v602, %v593
        %v610 = vadd.s32 %v605, %v607
        %vm611 = vc.u32 %v605, %v607
        %v612 = vadd.s32 %v608, 1
        %v613 = vsel %vm611, %v612, %v608
        %v614 = vadd.s32 %v609, %v613
        %v615 = vadd.s32 %v614, 536870912
        %v616 = vshrl.u32 %v615, 30
        %v617 = vshll.u32 %v616, 30
        %v618 = vsub.s32 %v614, %v617
        %vm619 = vcmp.lt.s32.totalorder %v618, 0
        %v620 = vsub.s32 0, %v618
        %v621 = vsel %vm619, %v620, %v618
        %v622 = vclz %v621
        %v623 = vsub.s32 %v622, 2
        %vm624 = vcmp.gt.s32.totalorder 0, %v623
        %v625 = vsel %vm624, 0, %v623
        %v626 = vsub.s32 32, %v625
        %v627 = vshll.u32 %v618, %v625
        %v628 = vshrl.u32 %v610, %v626
        %v629 = vor.u32 %v627, %v628
        %v630 = vsub.s32 4294967266, %v625
        %v631 = vadd.s32 %v630, 127
        %v632 = vshll.u32 %v631, 23
        %v633 = vor.u32 4788187, %v632
        %v634 = vand.u32 2147483647, %v633
        %v636 = vcvt.s32.f32 %v629
        %v637 = vmul.f32 %v636, %v634
        %v638 = vxor.u32 %v637, 2147483648
        %v639 = vsel %vm556, %v638, %v637
        %v640 = vsub.s32 4, %v616
        %v641 = vsel %vm556, %v640, %v616
        %v642 = vsel %vm555, %v240, %v639
        %v643 = vsel %vm555, 0, %v641
        %v644 = vcosq.f32.pop %v642
        %v645 = vsinq.f32.pop %v642
        %vm646 = vweird.f32 %v240
        %v647 = vand.u32 %v643, 3
        %vm648 = vcmp.lt.s32.totalorder %v647, 2
        %vm649 = vcmp.eq.s32.totalorder %v647, 0
        %v650 = vxor.u32 %v645, 2147483648
        %v651 = vsel %vm649, %v644, %v650
        %vm652 = vcmp.eq.s32.totalorder %v647, 2
        %v653 = vxor.u32 %v644, 2147483648
        %v654 = vsel %vm652, %v653, %v645
        %v655 = vsel %vm648, %v651, %v654
        %v656 = vsel %vm646, nan, %v655
        %v657 = vand.u32 2147483647, %v241
        %vm658 = vcmp.le.f32.partialorder %v657, 0.7853982
        %vm659 = vcmp.lt.s32.totalorder %v241, 0
        %v660 = vand.u32 %v241, 2139095040
        %v661 = vshrl.u32 %v660, 23
        %v662 = vsub.s32 %v661, 127
        %v663 = vand.u32 2147483647, %v241
        %v664 = vand.u32 %v663, 8388607
        %v665 = vor.u32 %v664, 8388608
        %v666 = vsub.s32 0, %v665
        %v667 = vadd.s32 %v662, 1
        %vm668 = vcmp.gt.s32.totalorder %v667, 0
        %v669 = vsel %vm668, %v667, 0
        %v670 = vshrl.u32 %v669, 5
        %v671 = vand.u32 %v669, 31
        %v672 = vsub.s32 32, %v671
        %v673 = vshrl.u32 683565275, %v672
        %v674 = vshll.u32 683565275, %v671
        %v675 = vshrl.u32 2475754826, %v672
        %v676 = vor.u32 %v674, %v675
        %v677 = vshll.u32 2475754826, %v671
        %v678 = vshrl.u32 2131351028, %v672
        %v679 = vor.u32 %v677, %v678
        %v680 = vshll.u32 2131351028, %v671
        %v681 = vshrl.u32 2102212464, %v672
        %v682 = vor.u32 %v680, %v681
        %v683 = vshll.u32 2102212464, %v671
        %v684 = vshrl.u32 920167782, %v672
        %v685 = vor.u32 %v683, %v684
        %v686 = vshll.u32 920167782, %v671
        %v687 = vshrl.u32 1326507024, %v672
        %v688 = vor.u32 %v686, %v687
        %vm689 = vcmp.lt.s32.totalorder %v670, 1
        %vm690 = vcmp.lt.s32.totalorder %v670, 2
        %vm691 = vcmp.lt.s32.totalorder %v670, 3
        %vm692 = vcmp.lt.s32.totalorder %v670, 4
        %v693 = vsel %vm689, %v673, %v676
        %v694 = vsel %vm692, %v682, 2102212464
        %v695 = vsel %vm691, %v679, %v694
        %v696 = vsel %vm690, %v693, %v695
        %v697 = vsel %vm689, %v676, %v679
        %v698 = vsel %vm692, %v685, 920167782
        %v699 = vsel %vm691, %v682, %v698
        %v700 = vsel %vm690, %v697, %v699
        %v701 = vsel %vm689, %v679, %v682
        %v702 = vsel %vm692, %v688, 1326507024
        %v703 = vsel %vm691, %v685, %v702
        %v704 = vsel %vm690, %v701, %v703
        %v705 = vshll.u32 %v665, 8
        %v706 = vmul.u32.u64.compose %v705, %v704
        %v707 = vextract.low.u32 %v706
        %v708 = vextract.high.u32 %v706
        %v709 = vmul.u32.u64.compose %v705, %v700
        %v710 = vextract.low.u32 %v709
        %v711 = vextract.high.u32 %v709
        %v712 = vmul.u32 %v705, %v696
        %v713 = vadd.s32 %v708, %v710
        %vm714 = vc.u32 %v708, %v710
        %v715 = vadd.s32 %v711, 1
        %v716 = vsel %vm714, %v715, %v711
        %v717 = vadd.s32 %v712, %v716
        %v718 = vadd.s32 %v717, 536870912
        %v719 = vshrl.u32 %v718, 30
        %v720 = vshll.u32 %v719, 30
        %v721 = vsub.s32 %v717, %v720
        %vm722 = vcmp.lt.s32.totalorder %v721, 0
        %v723 = vsub.s32 0, %v721
        %v724 = vsel %vm722, %v723, %v721
        %v725 = vclz %v724
        %v726 = vsub.s32 %v725, 2
        %vm727 = vcmp.gt.s32.totalorder 0, %v726
        %v728 = vsel %vm727, 0, %v726
        %v729 = vsub.s32 32, %v728
        %v730 = vshll.u32 %v721, %v728
        %v731 = vshrl.u32 %v713, %v729
        %v732 = vor.u32 %v730, %v731
        %v733 = vsub.s32 4294967266, %v728
        %v734 = vadd.s32 %v733, 127
        %v735 = vshll.u32 %v734, 23
        %v736 = vor.u32 4788187, %v735
        %v737 = vand.u32 2147483647, %v736
        %v739 = vcvt.s32.f32 %v732
        %v740 = vmul.f32 %v739, %v737
        %v741 = vxor.u32 %v740, 2147483648
        %v742 = vsel %vm659, %v741, %v740
        %v743 = vsub.s32 4, %v719
        %v744 = vsel %vm659, %v743, %v719
        %v745 = vsel %vm658, %v241, %v742
        %v746 = vsel %vm658, 0, %v744
        %v747 = vcosq.f32.pop %v745
        %v748 = vsinq.f32.pop %v745
        %vm749 = vweird.f32 %v241
        %v750 = vand.u32 %v746, 3
        %vm751 = vcmp.lt.s32.totalorder %v750, 2
        %vm752 = vcmp.eq.s32.totalorder %v750, 0
        %v753 = vxor.u32 %v748, 2147483648
        %v754 = vsel %vm752, %v747, %v753
        %vm755 = vcmp.eq.s32.totalorder %v750, 2
        %v756 = vxor.u32 %v747, 2147483648
        %v757 = vsel %vm755, %v756, %v748
        %v758 = vsel %vm751, %v754, %v757
        %v759 = vsel %vm749, nan, %v758
        %v760 = vand.u32 2147483647, %v242
        %vm761 = vcmp.le.f32.partialorder %v760, 0.7853982
        %vm762 = vcmp.lt.s32.totalorder %v242, 0
        %v763 = vand.u32 %v242, 2139095040
        %v764 = vshrl.u32 %v763, 23
        %v765 = vsub.s32 %v764, 127
        %v766 = vand.u32 2147483647, %v242
        %v767 = vand.u32 %v766, 8388607
        %v768 = vor.u32 %v767, 8388608
        %v769 = vsub.s32 0, %v768
        %v770 = vadd.s32 %v765, 1
        %vm771 = vcmp.gt.s32.totalorder %v770, 0
        %v772 = vsel %vm771, %v770, 0
        %v773 = vshrl.u32 %v772, 5
        %v774 = vand.u32 %v772, 31
        %v775 = vsub.s32 32, %v774
        %v776 = vshrl.u32 683565275, %v775
        %v777 = vshll.u32 683565275, %v774
        %v778 = vshrl.u32 2475754826, %v775
        %v779 = vor.u32 %v777, %v778
        %v780 = vshll.u32 2475754826, %v774
        %v781 = vshrl.u32 2131351028, %v775
        %v782 = vor.u32 %v780, %v781
        %v783 = vshll.u32 2131351028, %v774
        %v784 = vshrl.u32 2102212464, %v775
        %v785 = vor.u32 %v783, %v784
        %v786 = vshll.u32 2102212464, %v774
        %v787 = vshrl.u32 920167782, %v775
        %v788 = vor.u32 %v786, %v787
        %v789 = vshll.u32 920167782, %v774
        %v790 = vshrl.u32 1326507024, %v775
        %v791 = vor.u32 %v789, %v790
        %vm792 = vcmp.lt.s32.totalorder %v773, 1
        %vm793 = vcmp.lt.s32.totalorder %v773, 2
        %vm794 = vcmp.lt.s32.totalorder %v773, 3
        %vm795 = vcmp.lt.s32.totalorder %v773, 4
        %v796 = vsel %vm792, %v776, %v779
        %v797 = vsel %vm795, %v785, 2102212464
        %v798 = vsel %vm794, %v782, %v797
        %v799 = vsel %vm793, %v796, %v798
        %v800 = vsel %vm792, %v779, %v782
        %v801 = vsel %vm795, %v788, 920167782
        %v802 = vsel %vm794, %v785, %v801
        %v803 = vsel %vm793, %v800, %v802
        %v804 = vsel %vm792, %v782, %v785
        %v805 = vsel %vm795, %v791, 1326507024
        %v806 = vsel %vm794, %v788, %v805
        %v807 = vsel %vm793, %v804, %v806
        %v808 = vshll.u32 %v768, 8
        %v809 = vmul.u32.u64.compose %v808, %v807
        %v810 = vextract.low.u32 %v809
        %v811 = vextract.high.u32 %v809
        %v812 = vmul.u32.u64.compose %v808, %v803
        %v813 = vextract.low.u32 %v812
        %v814 = vextract.high.u32 %v812
        %v815 = vmul.u32 %v808, %v799
        %v816 = vadd.s32 %v811, %v813
        %vm817 = vc.u32 %v811, %v813
        %v818 = vadd.s32 %v814, 1
        %v819 = vsel %vm817, %v818, %v814
        %v820 = vadd.s32 %v815, %v819
        %v821 = vadd.s32 %v820, 536870912
        %v822 = vshrl.u32 %v821, 30
        %v823 = vshll.u32 %v822, 30
        %v824 = vsub.s32 %v820, %v823
        %vm825 = vcmp.lt.s32.totalorder %v824, 0
        %v826 = vsub.s32 0, %v824
        %v827 = vsel %vm825, %v826, %v824
        %v828 = vclz %v827
        %v829 = vsub.s32 %v828, 2
        %vm830 = vcmp.gt.s32.totalorder 0, %v829
        %v831 = vsel %vm830, 0, %v829
        %v832 = vsub.s32 32, %v831
        %v833 = vshll.u32 %v824, %v831
        %v834 = vshrl.u32 %v816, %v832
        %v835 = vor.u32 %v833, %v834
        %v836 = vsub.s32 4294967266, %v831
        %v837 = vadd.s32 %v836, 127
        %v838 = vshll.u32 %v837, 23
        %v839 = vor.u32 4788187, %v838
        %v840 = vand.u32 2147483647, %v839
        %v842 = vcvt.s32.f32 %v835
        %v843 = vmul.f32 %v842, %v840
        %v844 = vxor.u32 %v843, 2147483648
        %v845 = vsel %vm762, %v844, %v843
        %v846 = vsub.s32 4, %v822
        %v847 = vsel %vm762, %v846, %v822
        %v848 = vsel %vm761, %v242, %v845
        %v849 = vsel %vm761, 0, %v847
        %v850 = vcosq.f32.pop %v848
        %v851 = vsinq.f32.pop %v848
        %vm852 = vweird.f32 %v242
        %v853 = vand.u32 %v849, 3
        %vm854 = vcmp.lt.s32.totalorder %v853, 2
        %vm855 = vcmp.eq.s32.totalorder %v853, 0
        %v856 = vxor.u32 %v851, 2147483648
        %v857 = vsel %vm855, %v850, %v856
        %vm858 = vcmp.eq.s32.totalorder %v853, 2
        %v859 = vxor.u32 %v850, 2147483648
        %v860 = vsel %vm858, %v859, %v851
        %v861 = vsel %vm854, %v857, %v860
        %v862 = vsel %vm852, nan, %v861
        %v863 = vand.u32 2147483647, %v243
        %vm864 = vcmp.le.f32.partialorder %v863, 0.7853982
        %vm865 = vcmp.lt.s32.totalorder %v243, 0
        %v866 = vand.u32 %v243, 2139095040
        %v867 = vshrl.u32 %v866, 23
        %v868 = vsub.s32 %v867, 127
        %v869 = vand.u32 2147483647, %v243
        %v870 = vand.u32 %v869, 8388607
        %v871 = vor.u32 %v870, 8388608
        %v872 = vsub.s32 0, %v871
        %v873 = vadd.s32 %v868, 1
        %vm874 = vcmp.gt.s32.totalorder %v873, 0
        %v875 = vsel %vm874, %v873, 0
        %v876 = vshrl.u32 %v875, 5
        %v877 = vand.u32 %v875, 31
        %v878 = vsub.s32 32, %v877
        %v879 = vshrl.u32 683565275, %v878
        %v880 = vshll.u32 683565275, %v877
        %v881 = vshrl.u32 2475754826, %v878
        %v882 = vor.u32 %v880, %v881
        %v883 = vshll.u32 2475754826, %v877
        %v884 = vshrl.u32 2131351028, %v878
        %v885 = vor.u32 %v883, %v884
        %v886 = vshll.u32 2131351028, %v877
        %v887 = vshrl.u32 2102212464, %v878
        %v888 = vor.u32 %v886, %v887
        %v889 = vshll.u32 2102212464, %v877
        %v890 = vshrl.u32 920167782, %v878
        %v891 = vor.u32 %v889, %v890
        %v892 = vshll.u32 920167782, %v877
        %v893 = vshrl.u32 1326507024, %v878
        %v894 = vor.u32 %v892, %v893
        %vm895 = vcmp.lt.s32.totalorder %v876, 1
        %vm896 = vcmp.lt.s32.totalorder %v876, 2
        %vm897 = vcmp.lt.s32.totalorder %v876, 3
        %vm898 = vcmp.lt.s32.totalorder %v876, 4
        %v899 = vsel %vm895, %v879, %v882
        %v900 = vsel %vm898, %v888, 2102212464
        %v901 = vsel %vm897, %v885, %v900
        %v902 = vsel %vm896, %v899, %v901
        %v903 = vsel %vm895, %v882, %v885
        %v904 = vsel %vm898, %v891, 920167782
        %v905 = vsel %vm897, %v888, %v904
        %v906 = vsel %vm896, %v903, %v905
        %v907 = vsel %vm895, %v885, %v888
        %v908 = vsel %vm898, %v894, 1326507024
        %v909 = vsel %vm897, %v891, %v908
        %v910 = vsel %vm896, %v907, %v909
        %v911 = vshll.u32 %v871, 8
        %v912 = vmul.u32.u64.compose %v911, %v910
        %v913 = vextract.low.u32 %v912
        %v914 = vextract.high.u32 %v912
        %v915 = vmul.u32.u64.compose %v911, %v906
        %v916 = vextract.low.u32 %v915
        %v917 = vextract.high.u32 %v915
        %v918 = vmul.u32 %v911, %v902
        %v919 = vadd.s32 %v914, %v916
        %vm920 = vc.u32 %v914, %v916
        %v921 = vadd.s32 %v917, 1
        %v922 = vsel %vm920, %v921, %v917
        %v923 = vadd.s32 %v918, %v922
        %v924 = vadd.s32 %v923, 536870912
        %v925 = vshrl.u32 %v924, 30
        %v926 = vshll.u32 %v925, 30
        %v927 = vsub.s32 %v923, %v926
        %vm928 = vcmp.lt.s32.totalorder %v927, 0
        %v929 = vsub.s32 0, %v927
        %v930 = vsel %vm928, %v929, %v927
        %v931 = vclz %v930
        %v932 = vsub.s32 %v931, 2
        %vm933 = vcmp.gt.s32.totalorder 0, %v932
        %v934 = vsel %vm933, 0, %v932
        %v935 = vsub.s32 32, %v934
        %v936 = vshll.u32 %v927, %v934
        %v937 = vshrl.u32 %v919, %v935
        %v938 = vor.u32 %v936, %v937
        %v939 = vsub.s32 4294967266, %v934
        %v940 = vadd.s32 %v939, 127
        %v941 = vshll.u32 %v940, 23
        %v942 = vor.u32 4788187, %v941
        %v943 = vand.u32 2147483647, %v942
        %v945 = vcvt.s32.f32 %v938
        %v946 = vmul.f32 %v945, %v943
        %v947 = vxor.u32 %v946, 2147483648
        %v948 = vsel %vm865, %v947, %v946
        %v949 = vsub.s32 4, %v925
        %v950 = vsel %vm865, %v949, %v925
        %v951 = vsel %vm864, %v243, %v948
        %v952 = vsel %vm864, 0, %v950
        %v953 = vcosq.f32.pop %v951
        %v954 = vsinq.f32.pop %v951
        %vm955 = vweird.f32 %v243
        %v956 = vand.u32 %v952, 3
        %vm957 = vcmp.lt.s32.totalorder %v956, 2
        %vm958 = vcmp.eq.s32.totalorder %v956, 0
        %v959 = vxor.u32 %v954, 2147483648
        %v960 = vsel %vm958, %v953, %v959
        %vm961 = vcmp.eq.s32.totalorder %v956, 2
        %v962 = vxor.u32 %v953, 2147483648
        %v963 = vsel %vm961, %v962, %v954
        %v964 = vsel %vm957, %v960, %v963
        %v965 = vsel %vm955, nan, %v964
        %v966 = vand.u32 2147483647, %v244
        %vm967 = vcmp.le.f32.partialorder %v966, 0.7853982
        %vm968 = vcmp.lt.s32.totalorder %v244, 0
        %v969 = vand.u32 %v244, 2139095040
        %v970 = vshrl.u32 %v969, 23
        %v971 = vsub.s32 %v970, 127
        %v972 = vand.u32 2147483647, %v244
        %v973 = vand.u32 %v972, 8388607
        %v974 = vor.u32 %v973, 8388608
        %v975 = vsub.s32 0, %v974
        %v976 = vadd.s32 %v971, 1
        %vm977 = vcmp.gt.s32.totalorder %v976, 0
        %v978 = vsel %vm977, %v976, 0
        %v979 = vshrl.u32 %v978, 5
        %v980 = vand.u32 %v978, 31
        %v981 = vsub.s32 32, %v980
        %v982 = vshrl.u32 683565275, %v981
        %v983 = vshll.u32 683565275, %v980
        %v984 = vshrl.u32 2475754826, %v981
        %v985 = vor.u32 %v983, %v984
        %v986 = vshll.u32 2475754826, %v980
        %v987 = vshrl.u32 2131351028, %v981
        %v988 = vor.u32 %v986, %v987
        %v989 = vshll.u32 2131351028, %v980
        %v990 = vshrl.u32 2102212464, %v981
        %v991 = vor.u32 %v989, %v990
        %v992 = vshll.u32 2102212464, %v980
        %v993 = vshrl.u32 920167782, %v981
        %v994 = vor.u32 %v992, %v993
        %v995 = vshll.u32 920167782, %v980
        %v996 = vshrl.u32 1326507024, %v981
        %v997 = vor.u32 %v995, %v996
        %vm998 = vcmp.lt.s32.totalorder %v979, 1
        %vm999 = vcmp.lt.s32.totalorder %v979, 2
        %vm1000 = vcmp.lt.s32.totalorder %v979, 3
        %vm1001 = vcmp.lt.s32.totalorder %v979, 4
        %v1002 = vsel %vm998, %v982, %v985
        %v1003 = vsel %vm1001, %v991, 2102212464
        %v1004 = vsel %vm1000, %v988, %v1003
        %v1005 = vsel %vm999, %v1002, %v1004
        %v1006 = vsel %vm998, %v985, %v988
        %v1007 = vsel %vm1001, %v994, 920167782
        %v1008 = vsel %vm1000, %v991, %v1007
        %v1009 = vsel %vm999, %v1006, %v1008
        %v1010 = vsel %vm998, %v988, %v991
        %v1011 = vsel %vm1001, %v997, 1326507024
        %v1012 = vsel %vm1000, %v994, %v1011
        %v1013 = vsel %vm999, %v1010, %v1012
        %v1014 = vshll.u32 %v974, 8
        %v1015 = vmul.u32.u64.compose %v1014, %v1013
        %v1016 = vextract.low.u32 %v1015
        %v1017 = vextract.high.u32 %v1015
        %v1018 = vmul.u32.u64.compose %v1014, %v1009
        %v1019 = vextract.low.u32 %v1018
        %v1020 = vextract.high.u32 %v1018
        %v1021 = vmul.u32 %v1014, %v1005
        %v1022 = vadd.s32 %v1017, %v1019
        %vm1023 = vc.u32 %v1017, %v1019
        %v1024 = vadd.s32 %v1020, 1
        %v1025 = vsel %vm1023, %v1024, %v1020
        %v1026 = vadd.s32 %v1021, %v1025
        %v1027 = vadd.s32 %v1026, 536870912
        %v1028 = vshrl.u32 %v1027, 30
        %v1029 = vshll.u32 %v1028, 30
        %v1030 = vsub.s32 %v1026, %v1029
        %vm1031 = vcmp.lt.s32.totalorder %v1030, 0
        %v1032 = vsub.s32 0, %v1030
        %v1033 = vsel %vm1031, %v1032, %v1030
        %v1034 = vclz %v1033
        %v1035 = vsub.s32 %v1034, 2
        %vm1036 = vcmp.gt.s32.totalorder 0, %v1035
        %v1037 = vsel %vm1036, 0, %v1035
        %v1038 = vsub.s32 32, %v1037
        %v1039 = vshll.u32 %v1030, %v1037
        %v1040 = vshrl.u32 %v1022, %v1038
        %v1041 = vor.u32 %v1039, %v1040
        %v1042 = vsub.s32 4294967266, %v1037
        %v1043 = vadd.s32 %v1042, 127
        %v1044 = vshll.u32 %v1043, 23
        %v1045 = vor.u32 4788187, %v1044
        %v1046 = vand.u32 2147483647, %v1045
        %v1048 = vcvt.s32.f32 %v1041
        %v1049 = vmul.f32 %v1048, %v1046
        %v1050 = vxor.u32 %v1049, 2147483648
        %v1051 = vsel %vm968, %v1050, %v1049
        %v1052 = vsub.s32 4, %v1028
        %v1053 = vsel %vm968, %v1052, %v1028
        %v1054 = vsel %vm967, %v244, %v1051
        %v1055 = vsel %vm967, 0, %v1053
        %v1056 = vcosq.f32.pop %v1054
        %v1057 = vsinq.f32.pop %v1054
        %vm1058 = vweird.f32 %v244
        %v1059 = vand.u32 %v1055, 3
        %vm1060 = vcmp.lt.s32.totalorder %v1059, 2
        %vm1061 = vcmp.eq.s32.totalorder %v1059, 0
        %v1062 = vxor.u32 %v1057, 2147483648
        %v1063 = vsel %vm1061, %v1056, %v1062
        %vm1064 = vcmp.eq.s32.totalorder %v1059, 2
        %v1065 = vxor.u32 %v1056, 2147483648
        %v1066 = vsel %vm1064, %v1065, %v1057
        %v1067 = vsel %vm1060, %v1063, %v1066
        %v1068 = vsel %vm1058, nan, %v1067
        %1069 = vst [vmem:[%s162] sm:$0xff] %v347
        %1070 = vst [vmem:[%s162 + $0x8] sm:$0xff] %v450
        %1071 = vst [vmem:[%s162 + $0x10] sm:$0xff] %v553
        %1072 = vst [vmem:[%s162 + $0x18] sm:$0xff] %v656
        %1073 = vst [vmem:[%s162 + $0x20] sm:$0xff] %v759
        %1074 = vst [vmem:[%s162 + $0x28] sm:$0xff] %v862
        %1075 = vst [vmem:[%s162 + $0x30] sm:$0xff] %v965
        %1076 = vst [vmem:[%s162 + $0x38] sm:$0xff] %v1068
        %s1077 = sand.u32 %s93, 1
        %s1078 = scalar_lea.sflag [#allocation3], %s1077
        %s1079 = sand.u32 %s93, 1
        %s1080 = smul.addr %s1079, 64
        %s1081 = scalar_lea.vmem [#allocation2], %s1080
        // Predicated region
        $region33: #{tpu_custom_call.1} parent=31 // pred_check
          %p1082 = pneg %p103
        $region34: #{tpu_custom_call.1} parent=31 // pred_check_branch
          %1084 = sbr.rel (%p1082) target = $region36
        $region35: #{tpu_custom_call.1} parent=31 // pred_region
          %s1085 = smul.u32 2, %s17
          %s1087 = ssub.s32 1024, 1024
          %1088 = vsyncadd %s1078, %s1087
          %s1089 = smul.addr %s1085, 128
          %s1090 = scalar_lea.hbm %s3, %s1089
          %s1091 = sshll.u32 %s1081, 4
          %s1092 = int_to_ptr.vmem [resolvable:$true] %s1091
          %1097 = dma.vmem_to_hbm [thread:$0]  %s1092, 1024, %s1090, %s1078, 256, 512, 16
        $region36: #{tpu_custom_call.1} parent=31 // pred_fallthru
          _
      $region32: #{tpu_custom_call.1} parent=5 // pred_fallthru
        _
      %p1098 = scmp.le.s32.totalorder 2, %s12
      // Predicated region
      $region37: #{tpu_custom_call.1} parent=5 // pred_check
        %p1099 = pneg %p1098
      $region38: #{tpu_custom_call.1} parent=5 // pred_check_branch
        %1101 = sbr.rel (%p1099) target = $region40
      $region39: #{tpu_custom_call.1} parent=5 // pred_region
        %s1102 = ssub.s32 %s12, 2
        // Predicated region
        $region41: #{tpu_custom_call.1} parent=39 // pred_check
          %p1103 = pneg %p109
        $region42: #{tpu_custom_call.1} parent=39 // pred_check_branch
          %1105 = sbr.rel (%p1103) target = $region44
        $region43: #{tpu_custom_call.1} parent=39 // pred_region
          %s1106 = sand.u32 %s94, 1
          %s1107 = scalar_lea.sflag [#allocation3], %s1106
          %s1108 = sand.u32 %s94, 1
          %s1109 = smul.addr %s1108, 64
          %s1110 = scalar_lea.vmem [#allocation2], %s1109
          %1111 = dma.done %s1107, 1024
        $region44: #{tpu_custom_call.1} parent=39 // pred_fallthru
          _
      $region40: #{tpu_custom_call.1} parent=5 // pred_fallthru
        _
    $region6: #{tpu_custom_call.1} parent=1 // loop_footer
      %s16 = sadd.s32 1, %s12
    $region7: #{tpu_custom_call.1} parent=1 // loop_footer_branch
      %11 = sbr.rel target = $region3
    $region8: #{tpu_custom_call.1} parent=1 // loop_exit
      _
    %1112 = vsyncpa [#allocation3], 1
    %s1113 = scalar_lea.sflag [#allocation3], 1
    %1114 = vsyncpa %s1113, 1

</llo_original>
